<compile_context>
chip_gen: v6e
topology: v6e:2x2x1
jax: 0.10.0
libtpu: 0.0.40
codegen_flags: <defaults>
</compile_context>

<pallas_src>
import jax
import jax.numpy as jnp
from jax.experimental import pallas as pl
from jax.experimental.pallas import tpu as pltpu


def residual_block_kernel(x_ref, w1_ref, b1_ref, w2_ref, b2_ref, o_ref):
    # x_ref: (tm, D) f32, w*_ref: (D, D) bf16, b*_ref: (1, D) f32, o_ref: (tm, D)
    # Linear 1: bf16 MXU inputs, f32 accumulation.
    h = jnp.dot(x_ref[...].astype(jnp.bfloat16), w1_ref[...],
                preferred_element_type=jnp.float32) + b1_ref[...]
    h = jnp.maximum(h, 0.0)                                   # ReLU (f32, VPU)
    # Linear 2.
    y = jnp.dot(h.astype(jnp.bfloat16), w2_ref[...],
                preferred_element_type=jnp.float32) + b2_ref[...]
    # Residual add: re-read the x tile from VMEM here so its live range does not span
    # both matmuls (avoids vreg spills at large tm; load slots have slack).
    y = y + x_ref[...]
    o_ref[...] = jnp.maximum(y, 0.0).astype(o_ref.dtype)      # final ReLU


def _round_up(x, m):
    return -(-x // m) * m


def _pick_row_tile(B, preferred, min_grid=2):
    """Row tile: multiple of 8, <= preferred, keeping >= min_grid grid steps
    (so both v7x TensorCores get work and x/out stay double-buffered)."""
    b8 = _round_up(B, 8)
    tm = _round_up(min(preferred, b8), 8)
    while tm > 8 and -(-b8 // tm) < min_grid:
        tm = max(8, _round_up(tm // 2, 8))
    return tm


def _invariant_spec(shape):
    """BlockSpec for a grid-invariant operand: constant index_map, single-buffered."""
    index_map = lambda i: (0, 0)
    try:
        return pl.BlockSpec(shape, index_map, pipeline_mode=pl.Buffered(1))
    except TypeError:  # older jax without pipeline_mode on BlockSpec
        return pl.BlockSpec(shape, index_map)


def _vmem_limit_bytes(tm, D):
    """Scoped VMEM limit: enough for the working set, capped at ~80% of physical
    VMEM (~51 MiB on v7x, ~102 MiB on v5e/v6e), leaving headroom for Mosaic scratch."""
    try:
        capacity = pltpu.get_tpu_info().vmem_capacity_bytes
    except Exception:
        capacity = 64 * 1024 * 1024  # conservative: v7x per-TensorCore
    tile = tm * D * 4                    # one f32 (tm, D) tile
    weights = 2 * D * D * 2              # w1 + w2, bf16, single-buffered
    biases = 2 * D * 4
    needed = 2 * tile + 2 * tile + tile + weights + biases  # x dbl-buf + out dbl-buf + h
    needed = int(needed * 1.5)           # headroom for internal scratch / temporaries
    floor = 32 * 1024 * 1024
    ceiling = int(capacity * 0.8)
    return max(min(max(needed, floor), ceiling), 16 * 1024 * 1024)


def residual_block(x, w1, b1, w2, b2, *, tm=None, out_dtype=None):
    """x: (B, D) f32; w1/w2: (D, D) pre-transposed to (in, out); b1/b2: (D,).

    Pads the batch to a multiple of the row tile and slices the result, so any
    batch size works without collapsing to tiny MXU-wasting tiles.
    """
    B, D = x.shape
    out_dtype = x.dtype if out_dtype is None else out_dtype
    if tm is None:
        # Mem-bound at small D: larger row tiles -> bigger DMAs, fewer grid steps.
        tm = 512 if D <= 512 else 256
    tm = _pick_row_tile(B, tm)
    B_pad = _round_up(max(B, tm), tm)
    x_in = jnp.pad(x, ((0, B_pad - B), (0, 0))) if B_pad != B else x

    # Pre-cast weights to bf16 (MXU inputs); biases to a lane-aligned (1, D) f32 row.
    w1_bf = w1.astype(jnp.bfloat16)
    w2_bf = w2.astype(jnp.bfloat16)
    b1_2d = b1.reshape(1, D).astype(jnp.float32)
    b2_2d = b2.reshape(1, D).astype(jnp.float32)

    out = pl.pallas_call(
        residual_block_kernel,
        out_shape=jax.ShapeDtypeStruct((B_pad, D), out_dtype),
        grid_spec=pltpu.PrefetchScalarGridSpec(
            num_scalar_prefetch=0,
            grid=(B_pad // tm,),
            in_specs=[
                pl.BlockSpec((tm, D), lambda i: (i, 0)),   # x row tile (double-buffered)
                _invariant_spec((D, D)),                   # w1 (full, bf16, single-buffered)
                _invariant_spec((1, D)),                   # b1
                _invariant_spec((D, D)),                   # w2 (full, bf16, single-buffered)
                _invariant_spec((1, D)),                   # b2
            ],
            out_specs=pl.BlockSpec((tm, D), lambda i: (i, 0)),
        ),
        compiler_params=pltpu.CompilerParams(
            dimension_semantics=("parallel",),             # batch axis shards across TCs
            vmem_limit_bytes=_vmem_limit_bytes(tm, D),
        ),
    )(x_in, w1_bf, b1_2d, w2_bf, b2_2d)

    return out[:B] if B_pad != B else out


def residual_block_ref_f32(x, w1, b1, w2, b2):
    h = jnp.maximum(x @ w1 + b1, 0.0)
    y = h @ w2 + b2 + x
    return jnp.maximum(y, 0.0)


def residual_block_ref_bf16(x, w1, b1, w2, b2):
    # Mirrors the kernel's numerics: bf16 MXU inputs, f32 accumulation / elementwise.
    w1b = w1.astype(jnp.bfloat16)
    w2b = w2.astype(jnp.bfloat16)
    h = jnp.dot(x.astype(jnp.bfloat16), w1b, preferred_element_type=jnp.float32) + b1
    h = jnp.maximum(h, 0.0)
    y = jnp.dot(h.astype(jnp.bfloat16), w2b, preferred_element_type=jnp.float32) + b2 + x
    return jnp.maximum(y, 0.0)


if __name__ == "__main__":
    # Small, deterministic example: dim=128 (lane-aligned), batch=200 deliberately not a
    # multiple of the tile to exercise the pad/slice path (use_bn=False forward path).
    B, D = 200, 128
    key = jax.random.PRNGKey(0)
    kx, kw1, kb1, kw2, kb2 = jax.random.split(key, 5)

    x = jax.random.normal(kx, (B, D), dtype=jnp.float32)
    # nn.Linear(dim, dim) weights are (out, in); init deterministically, store transposed.
    bound = 1.0 / (D ** 0.5)
    w1_t = jax.random.uniform(kw1, (D, D), minval=-bound, maxval=bound, dtype=jnp.float32).T
    b1 = jax.random.uniform(kb1, (D,), minval=-bound, maxval=bound, dtype=jnp.float32)
    w2_t = jax.random.uniform(kw2, (D, D), minval=-bound, maxval=bound, dtype=jnp.float32).T
    b2 = jax.random.uniform(kb2, (D,), minval=-bound, maxval=bound, dtype=jnp.float32)

    out = jax.block_until_ready(residual_block(x, w1_t, b1, w2_t, b2))
    assert out.shape == (B, D), out.shape

    # Tight check against a reference with identical (bf16-matmul) numerics.
    ref_matched = residual_block_ref_bf16(x, w1_t, b1, w2_t, b2)
    assert jnp.allclose(out, ref_matched, atol=2e-3, rtol=2e-3), "mismatch vs matched reference"

    # Loose check against the pure-f32 reference (bf16 MXU inputs, f32 accumulation).
    ref_f32 = residual_block_ref_f32(x, w1_t, b1, w2_t, b2)
    assert jnp.allclose(out, ref_f32, atol=5e-2, rtol=5e-2), "mismatch vs f32 reference"

    print("KERNEL_OK")
</pallas_src>

<mosaic_0001>
module attributes {stable_mosaic.version = 11 : i64} {
  func.func @residual_block_kernel(%arg0: i32, %arg1: memref<104x128xf32, #tpu.memory_space<vmem>>, %arg2: memref<128x128xbf16, #tpu.memory_space<vmem>>, %arg3: memref<1x128xf32, #tpu.memory_space<vmem>>, %arg4: memref<128x128xbf16, #tpu.memory_space<vmem>>, %arg5: memref<1x128xf32, #tpu.memory_space<vmem>>, %arg6: memref<104x128xf32, #tpu.memory_space<vmem>>) attributes {dimension_semantics = [#tpu.dimension_semantics<parallel>], iteration_bounds = array<i64: 2>, scalar_prefetch = 0 : i64, scratch_operands = 0 : i64, tpu.core_type = #tpu.core_type<tc>, window_params = [{transform_indices = @transform_0, window_bounds = array<i64: 104, 128>}, {pipeline_mode = #tpu.pipeline_mode<synchronous>, transform_indices = @transform_1, window_bounds = array<i64: 128, 128>}, {pipeline_mode = #tpu.pipeline_mode<synchronous>, transform_indices = @transform_2, window_bounds = array<i64: 1, 128>}, {pipeline_mode = #tpu.pipeline_mode<synchronous>, transform_indices = @transform_3, window_bounds = array<i64: 128, 128>}, {pipeline_mode = #tpu.pipeline_mode<synchronous>, transform_indices = @transform_4, window_bounds = array<i64: 1, 128>}, {transform_indices = @transform_5, window_bounds = array<i64: 104, 128>}]} {
    %c0 = arith.constant 0 : index
    %c0_0 = arith.constant 0 : index
    %0 = vector.load %arg1[%c0, %c0_0] : memref<104x128xf32, #tpu.memory_space<vmem>>, vector<104x128xf32>
    %1 = arith.truncf %0 : vector<104x128xf32> to vector<104x128xbf16>
    %c0_1 = arith.constant 0 : index
    %c0_2 = arith.constant 0 : index
    %2 = vector.load %arg2[%c0_1, %c0_2] : memref<128x128xbf16, #tpu.memory_space<vmem>>, vector<128x128xbf16>
    %cst = arith.constant dense<0.000000e+00> : vector<104x128xf32>
    %3 = tpu.matmul %1, %2, %cst {dimension_numbers = #tpu.dot_dimension_numbers<[1], [0], [0], [1], [0, 0, 1, 1], [], []>} : vector<104x128xbf16>, vector<128x128xbf16>, vector<104x128xf32> -> vector<104x128xf32>
    %c0_3 = arith.constant 0 : index
    %c0_4 = arith.constant 0 : index
    %4 = vector.load %arg3[%c0_3, %c0_4] : memref<1x128xf32, #tpu.memory_space<vmem>>, vector<1x128xf32>
    %5 = vector.broadcast %4 : vector<1x128xf32> to vector<104x128xf32>
    %6 = arith.addf %3, %5 : vector<104x128xf32>
    %cst_5 = arith.constant 0.000000e+00 : f32
    %7 = vector.broadcast %cst_5 : f32 to vector<104x128xf32>
    %8 = arith.maximumf %6, %7 : vector<104x128xf32>
    %9 = arith.truncf %8 : vector<104x128xf32> to vector<104x128xbf16>
    %c0_6 = arith.constant 0 : index
    %c0_7 = arith.constant 0 : index
    %10 = vector.load %arg4[%c0_6, %c0_7] : memref<128x128xbf16, #tpu.memory_space<vmem>>, vector<128x128xbf16>
    %cst_8 = arith.constant dense<0.000000e+00> : vector<104x128xf32>
    %11 = tpu.matmul %9, %10, %cst_8 {dimension_numbers = #tpu.dot_dimension_numbers<[1], [0], [0], [1], [0, 0, 1, 1], [], []>} : vector<104x128xbf16>, vector<128x128xbf16>, vector<104x128xf32> -> vector<104x128xf32>
    %c0_9 = arith.constant 0 : index
    %c0_10 = arith.constant 0 : index
    %12 = vector.load %arg5[%c0_9, %c0_10] : memref<1x128xf32, #tpu.memory_space<vmem>>, vector<1x128xf32>
    %13 = vector.broadcast %12 : vector<1x128xf32> to vector<104x128xf32>
    %14 = arith.addf %11, %13 : vector<104x128xf32>
    %c0_11 = arith.constant 0 : index
    %c0_12 = arith.constant 0 : index
    %15 = vector.load %arg1[%c0_11, %c0_12] : memref<104x128xf32, #tpu.memory_space<vmem>>, vector<104x128xf32>
    %16 = arith.addf %14, %15 : vector<104x128xf32>
    %cst_13 = arith.constant 0.000000e+00 : f32
    %17 = vector.broadcast %cst_13 : f32 to vector<104x128xf32>
    %18 = arith.maximumf %16, %17 : vector<104x128xf32>
    %c0_14 = arith.constant 0 : index
    %c0_15 = arith.constant 0 : index
    %19 = vector.load %arg6[%c0_14, %c0_15] : memref<104x128xf32, #tpu.memory_space<vmem>>, vector<104x128xf32>
    tpu.vector_store %arg6[%c0_14, %c0_15], %18 {strides = array<i32>} : memref<104x128xf32, #tpu.memory_space<vmem>>, vector<104x128xf32>,
    return
  }
  func.func @transform_0(%arg0: i32) -> (i32, i32) {
    %c0_i32 = arith.constant 0 : i32
    %c0_i32_0 = arith.constant 0 : i32
    return %arg0, %c0_i32 : i32, i32
  }
  func.func @transform_1(%arg0: i32) -> (i32, i32) {
    %c0_i32 = arith.constant 0 : i32
    %c0_i32_0 = arith.constant 0 : i32
    %c0_i32_1 = arith.constant 0 : i32
    return %c0_i32, %c0_i32_0 : i32, i32
  }
  func.func @transform_2(%arg0: i32) -> (i32, i32) {
    %c0_i32 = arith.constant 0 : i32
    %c0_i32_0 = arith.constant 0 : i32
    %c0_i32_1 = arith.constant 0 : i32
    return %c0_i32, %c0_i32_0 : i32, i32
  }
  func.func @transform_3(%arg0: i32) -> (i32, i32) {
    %c0_i32 = arith.constant 0 : i32
    %c0_i32_0 = arith.constant 0 : i32
    %c0_i32_1 = arith.constant 0 : i32
    return %c0_i32, %c0_i32_0 : i32, i32
  }
  func.func @transform_4(%arg0: i32) -> (i32, i32) {
    %c0_i32 = arith.constant 0 : i32
    %c0_i32_0 = arith.constant 0 : i32
    %c0_i32_1 = arith.constant 0 : i32
    return %c0_i32, %c0_i32_0 : i32, i32
  }
  func.func @transform_5(%arg0: i32) -> (i32, i32) {
    %c0_i32 = arith.constant 0 : i32
    %c0_i32_0 = arith.constant 0 : i32
    return %arg0, %c0_i32 : i32, i32
  }
}

</mosaic_0001>

<llo_original>
// kernel: tpu_custom_call.1
$region0: #{tpu_custom_call.1}
  #allocation0 [shape = 'u32[]', space=smem, size = 0x4, offset = 0x4, fixed_abs, tag = 'smem constant byte address 0x4 - core index']
  #allocation1 [shape = 'u32[144,128]{1,0:T(1,128)}', space=vmem, size = 0x12000, scoped, tag = 'internal scratch']
  %s0 = inlined_call_operand.hbm [shape: f32[208,128], index: 0, kind: input, shape index: {}]
  %s1 = inlined_call_operand.hbm [shape: bf16[128,128], index: 1, kind: input, shape index: {}]
  %s2 = inlined_call_operand.vmem [shape: f32[1,128], index: 2, kind: input, shape index: {}]
  %s3 = inlined_call_operand.hbm [shape: bf16[128,128], index: 3, kind: input, shape index: {}]
  %s4 = inlined_call_operand.vmem [shape: f32[1,128], index: 4, kind: input, shape index: {}]
  %s5 = inlined_call_operand.hbm [shape: f32[208,128], index: 5, kind: output, shape index: {}]
  %s6 = sld [smem:[#allocation0]]
  $region65: #{tpu_custom_call.1} parent=0
    _
  %s8 = ssub.s32 1, %s6
  %s9 = scalar_select 0, %s8, %s6
  $region1: #{tpu_custom_call.1} parent=0
    #allocation2 [shape = 'u8[106496]{0}', space=vmem, size = 0x1a000, scoped, tag = 'input window, operand 0']
    #allocation3 [shape = 's32[2]{0}', space=sflag, size = 0x8, scoped, tag = 'scoped memory for tpu_custom_call.1']
    #allocation4 [shape = 's32[2]{0}', space=sflag, size = 0x8, scoped, tag = 'scoped memory for tpu_custom_call.1']
    #allocation5 [shape = 'u8[32768]{0}', space=vmem, size = 0x8000, scoped, tag = 'input window, operand 1, single buffered']
    #allocation6 [shape = 's32[1]{0}', space=sflag, size = 0x4, scoped, tag = 'scoped memory for tpu_custom_call.1']
    #allocation7 [shape = 'u8[32768]{0}', space=vmem, size = 0x8000, scoped, tag = 'input window, operand 3, single buffered']
    #allocation8 [shape = 'u8[106496]{0}', space=vmem, size = 0x1a000, scoped, tag = 'output window, operand 0']
    %10 = vsyncpa [#allocation3], 0
    %s11 = scalar_lea.sflag [#allocation3], 1
    %12 = vsyncpa %s11, 0
    %13 = vsyncpa [#allocation6], 0
    %14 = vsyncpa [#allocation4], 0
    %s15 = scalar_lea.sflag [#allocation4], 1
    %16 = vsyncpa %s15, 0
    loop: start=0, step=1, limit=4
    $region2: #{tpu_custom_call.1} parent=1 // loop_pre_header
      _
    $region3: #{tpu_custom_call.1} parent=1 // loop_header
      %s18 = sphi 0, %s22
      %p19 = scmp.ge.s32.totalorder %s18, 4
      %s28 = sphi 0, %s30
      %s31 = sphi 0, %s28
      %s32 = sphi 0, %s31
      %s48 = sphi 0, %s32
      %s52 = sphi 0, %s52
      %s54 = sphi 0, %s52
      %s55 = sphi 0, %s54
      %s69 = sphi 0, %s55
      %s73 = sphi 0, %s73
      %s75 = sphi 0, %s73
      %s76 = sphi 0, %s75
      %s90 = sphi 0, %s76
      %s94 = sphi 0, %s94
      %s96 = sphi 0, %s94
      %s97 = sphi 0, %s96
      %s111 = sphi 0, %s97
      %s115 = sphi 0, %s115
      %s117 = sphi 0, %s115
      %s118 = sphi 0, %s117
      %s132 = sphi 0, %s118
      %s138 = sphi 0, %s140
      %s141 = sphi 0, %s138
      %s142 = sphi 0, %s141
      %s158 = sphi 0, %s142
    $region4: #{tpu_custom_call.1} parent=1 // loop_header_branch
      %21 = sbr.rel (%p19) target = $region8
    $region5: #{tpu_custom_call.1} parent=1 // loop_body
      %s23 = ssub.s32 %s18, 1
      %s24 = ssub.s32 %s18, 2
      %s25 = sadd.s32 %s18, 1
      %s26 = ssub.s32 %s18, %s25
      %p27 = scmp.eq.s32.totalorder %s26, 0
      %s29 = sadd.s32 %s28, 1
      %s30 = scalar_select %p27, %s28, %s29
      %p33 = pneg %p27
      %p34 = scmp.eq.s32.totalorder %s18, 1
      %p35 = por %p33, %p34
      %p36 = scmp.ne.s32.totalorder %s28, %s31
      %p37 = scmp.eq.s32.totalorder %s18, 0
      %p38 = por %p36, %p37
      %p39 = scmp.ne.s32.totalorder %s28, %s31
      %p40 = scmp.eq.s32.totalorder %s23, 1
      %p41 = por %p39, %p40
      %p42 = scmp.ne.s32.totalorder %s31, %s32
      %p43 = scmp.eq.s32.totalorder %s23, 0
      %p44 = por %p42, %p43
      %p45 = scmp.ne.s32.totalorder %s31, %s32
      %p46 = scmp.eq.s32.totalorder %s24, 1
      %p47 = por %p45, %p46
      %p49 = scmp.ne.s32.totalorder %s32, %s48
      %p50 = scmp.eq.s32.totalorder %s24, 0
      %p51 = por %p49, %p50
      %s53 = sadd.s32 %s52, 1
      %p56 = scmp.eq.s32.totalorder %s18, 1
      %p57 = scmp.ne.s32.totalorder %s52, %s54
      %p58 = scmp.eq.s32.totalorder %s18, 0
      %p59 = por %p57, %p58
      %p60 = scmp.ne.s32.totalorder %s52, %s54
      %p61 = scmp.eq.s32.totalorder %s23, 1
      %p62 = por %p60, %p61
      %p63 = scmp.ne.s32.totalorder %s54, %s55
      %p64 = scmp.eq.s32.totalorder %s23, 0
      %p65 = por %p63, %p64
      %p66 = scmp.ne.s32.totalorder %s54, %s55
      %p67 = scmp.eq.s32.totalorder %s24, 1
      %p68 = por %p66, %p67
      %p70 = scmp.ne.s32.totalorder %s55, %s69
      %p71 = scmp.eq.s32.totalorder %s24, 0
      %p72 = por %p70, %p71
      %s74 = sadd.s32 %s73, 1
      %p77 = scmp.eq.s32.totalorder %s18, 1
      %p78 = scmp.ne.s32.totalorder %s73, %s75
      %p79 = scmp.eq.s32.totalorder %s18, 0
      %p80 = por %p78, %p79
      %p81 = scmp.ne.s32.totalorder %s73, %s75
      %p82 = scmp.eq.s32.totalorder %s23, 1
      %p83 = por %p81, %p82
      %p84 = scmp.ne.s32.totalorder %s75, %s76
      %p85 = scmp.eq.s32.totalorder %s23, 0
      %p86 = por %p84, %p85
      %p87 = scmp.ne.s32.totalorder %s75, %s76
      %p88 = scmp.eq.s32.totalorder %s24, 1
      %p89 = por %p87, %p88
      %p91 = scmp.ne.s32.totalorder %s76, %s90
      %p92 = scmp.eq.s32.totalorder %s24, 0
      %p93 = por %p91, %p92
      %s95 = sadd.s32 %s94, 1
      %p98 = scmp.eq.s32.totalorder %s18, 1
      %p99 = scmp.ne.s32.totalorder %s94, %s96
      %p100 = scmp.eq.s32.totalorder %s18, 0
      %p101 = por %p99, %p100
      %p102 = scmp.ne.s32.totalorder %s94, %s96
      %p103 = scmp.eq.s32.totalorder %s23, 1
      %p104 = por %p102, %p103
      %p105 = scmp.ne.s32.totalorder %s96, %s97
      %p106 = scmp.eq.s32.totalorder %s23, 0
      %p107 = por %p105, %p106
      %p108 = scmp.ne.s32.totalorder %s96, %s97
      %p109 = scmp.eq.s32.totalorder %s24, 1
      %p110 = por %p108, %p109
      %p112 = scmp.ne.s32.totalorder %s97, %s111
      %p113 = scmp.eq.s32.totalorder %s24, 0
      %p114 = por %p112, %p113
      %s116 = sadd.s32 %s115, 1
      %p119 = scmp.eq.s32.totalorder %s18, 1
      %p120 = scmp.ne.s32.totalorder %s115, %s117
      %p121 = scmp.eq.s32.totalorder %s18, 0
      %p122 = por %p120, %p121
      %p123 = scmp.ne.s32.totalorder %s115, %s117
      %p124 = scmp.eq.s32.totalorder %s23, 1
      %p125 = por %p123, %p124
      %p126 = scmp.ne.s32.totalorder %s117, %s118
      %p127 = scmp.eq.s32.totalorder %s23, 0
      %p128 = por %p126, %p127
      %p129 = scmp.ne.s32.totalorder %s117, %s118
      %p130 = scmp.eq.s32.totalorder %s24, 1
      %p131 = por %p129, %p130
      %p133 = scmp.ne.s32.totalorder %s118, %s132
      %p134 = scmp.eq.s32.totalorder %s24, 0
      %p135 = por %p133, %p134
      %s136 = ssub.s32 %s18, %s25
      %p137 = scmp.eq.s32.totalorder %s136, 0
      %s139 = sadd.s32 %s138, 1
      %s140 = scalar_select %p137, %s138, %s139
      %p143 = pneg %p137
      %p144 = scmp.eq.s32.totalorder %s18, 1
      %p145 = por %p143, %p144
      %p146 = scmp.ne.s32.totalorder %s138, %s141
      %p147 = scmp.eq.s32.totalorder %s18, 0
      %p148 = por %p146, %p147
      %p149 = scmp.ne.s32.totalorder %s138, %s141
      %p150 = scmp.eq.s32.totalorder %s23, 1
      %p151 = por %p149, %p150
      %p152 = scmp.ne.s32.totalorder %s141, %s142
      %p153 = scmp.eq.s32.totalorder %s23, 0
      %p154 = por %p152, %p153
      %p155 = scmp.ne.s32.totalorder %s141, %s142
      %p156 = scmp.eq.s32.totalorder %s24, 1
      %p157 = por %p155, %p156
      %p159 = scmp.ne.s32.totalorder %s142, %s158
      %p160 = scmp.eq.s32.totalorder %s24, 0
      %p161 = por %p159, %p160
      %p162 = scmp.le.s32.totalorder 1, %s18
      %p163 = scmp.lt.s32.totalorder %s18, 3
      %p164 = pnand %p162, %p163
      %p165 = pneg %p164
      // Predicated region
      $region9: #{tpu_custom_call.1} parent=5 // pred_check
        _
      $region10: #{tpu_custom_call.1} parent=5 // pred_check_branch
        %167 = sbr.rel (%p164) target = $region12
      $region11: #{tpu_custom_call.1} parent=5 // pred_region
        %s168 = ssub.s32 %s18, 1
        // Predicated region
        $region13: #{tpu_custom_call.1} parent=11 // pred_check
          %p169 = pneg %p65
        $region14: #{tpu_custom_call.1} parent=11 // pred_check_branch
          %171 = sbr.rel (%p169) target = $region16
        $region15: #{tpu_custom_call.1} parent=11 // pred_region
          %s173 = ssub.s32 1024, 1024
          %174 = vsyncadd [#allocation6], %s173
          %s175 = sshll.u32 [#allocation5], 4
          %s176 = int_to_ptr.vmem [resolvable:$true] %s175
          %181 = dma.hbm_to_vmem [thread:$0]  %s1, 1024, %s176, [#allocation6], 64, 64, 4
        $region16: #{tpu_custom_call.1} parent=11 // pred_fallthru
          _
        // Predicated region
        $region17: #{tpu_custom_call.1} parent=11 // pred_check
          %p182 = pneg %p86
        $region18: #{tpu_custom_call.1} parent=11 // pred_check_branch
          %184 = sbr.rel (%p182) target = $region20
        $region19: #{tpu_custom_call.1} parent=11 // pred_region
          _
        $region20: #{tpu_custom_call.1} parent=11 // pred_fallthru
          _
        // Predicated region
        $region21: #{tpu_custom_call.1} parent=11 // pred_check
          %p185 = pneg %p107
        $region22: #{tpu_custom_call.1} parent=11 // pred_check_branch
          %187 = sbr.rel (%p185) target = $region24
        $region23: #{tpu_custom_call.1} parent=11 // pred_region
          %s189 = ssub.s32 1024, 1024
          %190 = vsyncadd [#allocation6], %s189
          %s191 = sshll.u32 [#allocation7], 4
          %s192 = int_to_ptr.vmem [resolvable:$true] %s191
          %197 = dma.hbm_to_vmem [thread:$0]  %s3, 1024, %s192, [#allocation6], 64, 64, 4
        $region24: #{tpu_custom_call.1} parent=11 // pred_fallthru
          _
        // Predicated region
        $region25: #{tpu_custom_call.1} parent=11 // pred_check
          %p198 = pneg %p128
        $region26: #{tpu_custom_call.1} parent=11 // pred_check_branch
          %200 = sbr.rel (%p198) target = $region28
        $region27: #{tpu_custom_call.1} parent=11 // pred_region
          _
        $region28: #{tpu_custom_call.1} parent=11 // pred_fallthru
          _
      $region12: #{tpu_custom_call.1} parent=5 // pred_fallthru
        _
      %p201 = scmp.lt.s32.totalorder %s18, 2
      // Predicated region
      $region29: #{tpu_custom_call.1} parent=5 // pred_check
        %p202 = pneg %p201
      $region30: #{tpu_custom_call.1} parent=5 // pred_check_branch
        %204 = sbr.rel (%p202) target = $region32
      $region31: #{tpu_custom_call.1} parent=5 // pred_region
        // Predicated region
        $region33: #{tpu_custom_call.1} parent=31 // pred_check
          %p205 = pneg %p38
        $region34: #{tpu_custom_call.1} parent=31 // pred_check_branch
          %207 = sbr.rel (%p205) target = $region36
        $region35: #{tpu_custom_call.1} parent=31 // pred_region
          %s208 = sand.u32 %s28, 1
          %s209 = scalar_lea.sflag [#allocation3], %s208
          %s210 = sand.u32 %s28, 1
          %s211 = smul.addr %s210, 104
          %s212 = scalar_lea.vmem [#allocation2], %s211
          %s213 = smul.u32 13, %s18
          %s215 = ssub.s32 1664, 1664
          %216 = vsyncadd %s209, %s215
          %s217 = smul.addr %s213, 128
          %s218 = scalar_lea.hbm %s0, %s217
          %s219 = sshll.u32 %s212, 4
          %s220 = int_to_ptr.vmem [resolvable:$true] %s219
          %225 = dma.hbm_to_vmem [thread:$0]  %s218, 1664, %s220, %s209, 128, 128, 8
        $region36: #{tpu_custom_call.1} parent=31 // pred_fallthru
          _
      $region32: #{tpu_custom_call.1} parent=5 // pred_fallthru
        _
      %p226 = scmp.le.s32.totalorder 1, %s18
      %p227 = scmp.lt.s32.totalorder %s18, 3
      %p228 = pnand %p226, %p227
      %p229 = pneg %p228
      // Predicated region
      $region37: #{tpu_custom_call.1} parent=5 // pred_check
        _
      $region38: #{tpu_custom_call.1} parent=5 // pred_check_branch
        %231 = sbr.rel (%p228) target = $region40
      $region39: #{tpu_custom_call.1} parent=5 // pred_region
        %s232 = ssub.s32 %s18, 1
        %s233 = sand.u32 %s31, 1
        %s234 = scalar_lea.sflag [#allocation3], %s233
        %s235 = sand.u32 %s31, 1
        %s236 = smul.addr %s235, 104
        %s237 = scalar_lea.vmem [#allocation2], %s236
        // Predicated region
        $region41: #{tpu_custom_call.1} parent=39 // pred_check
          %p238 = pneg %p44
        $region42: #{tpu_custom_call.1} parent=39 // pred_check_branch
          %240 = sbr.rel (%p238) target = $region44
        $region43: #{tpu_custom_call.1} parent=39 // pred_region
          %241 = dma.done %s234, 1664
        $region44: #{tpu_custom_call.1} parent=39 // pred_fallthru
          _
        // Predicated region
        $region45: #{tpu_custom_call.1} parent=39 // pred_check
          %p242 = pneg %p65
        $region46: #{tpu_custom_call.1} parent=39 // pred_check_branch
          %244 = sbr.rel (%p242) target = $region48
        $region47: #{tpu_custom_call.1} parent=39 // pred_region
          %245 = dma.done [#allocation6], 1024
        $region48: #{tpu_custom_call.1} parent=39 // pred_fallthru
          _
        // Predicated region
        $region49: #{tpu_custom_call.1} parent=39 // pred_check
          %p246 = pneg %p107
        $region50: #{tpu_custom_call.1} parent=39 // pred_check_branch
          %248 = sbr.rel (%p246) target = $region52
        $region51: #{tpu_custom_call.1} parent=39 // pred_region
          %249 = dma.done [#allocation6], 1024
        $region52: #{tpu_custom_call.1} parent=39 // pred_fallthru
          _
        %s250 = sand.u32 %s31, 1
        %s251 = scalar_lea.sflag [#allocation3], %s250
        %s252 = sand.u32 %s31, 1
        %s253 = smul.addr %s252, 104
        %s254 = scalar_lea.vmem [#allocation2], %s253
        %p255 = pneg %p44
        %p256 = pneg %p41
        %p257 = pneg %p65
        %p258 = pneg %p62
        %p259 = pneg %p86
        %p260 = pneg %p83
        %p261 = pneg %p107
        %p262 = pneg %p104
        %p263 = pneg %p128
        %p264 = pneg %p125
        %p265 = pneg %p154
        %p266 = pneg %p151
        %s267 = sand.u32 %s141, 1
        %s268 = scalar_lea.sflag [#allocation4], %s267
        %s269 = sand.u32 %s141, 1
        %s270 = smul.addr %s269, 104
        %s271 = scalar_lea.vmem [#allocation8], %s270
        %s272 = smul.u32 13, %s23
        %s273 = smul.u32 13, %s23
        %v275 = vld [vmem:[%s237] sm:$0xff]
        %v276 = vld [vmem:[%s237 + $0x8] sm:$0xff]
        %v277 = vld [vmem:[%s237 + $0x10] sm:$0xff]
        %v278 = vld [vmem:[%s237 + $0x18] sm:$0xff]
        %v279 = vld [vmem:[%s237 + $0x20] sm:$0xff]
        %v280 = vld [vmem:[%s237 + $0x28] sm:$0xff]
        %v281 = vld [vmem:[%s237 + $0x30] sm:$0xff]
        %v282 = vld [vmem:[%s237 + $0x38] sm:$0xff]
        %v283 = vld [vmem:[%s237 + $0x40] sm:$0xff]
        %v284 = vld [vmem:[%s237 + $0x48] sm:$0xff]
        %v285 = vld [vmem:[%s237 + $0x50] sm:$0xff]
        %v286 = vld [vmem:[%s237 + $0x58] sm:$0xff]
        %v287 = vld [vmem:[%s237 + $0x60] sm:$0xff]
        %v288 = vpack.c.bf16 %v276, %v275
        %v289 = vpack.c.bf16 %v278, %v277
        %v290 = vpack.c.bf16 %v280, %v279
        %v291 = vpack.c.bf16 %v282, %v281
        %v292 = vpack.c.bf16 %v284, %v283
        %v293 = vpack.c.bf16 %v286, %v285
        %v294 = vpack.c.bf16 %v287, %v287
        %v295 = vld [vmem:[#allocation5] sm:$0xf]
        %v296 = vld [vmem:[#allocation5 + $0x4] sm:$0xf]
        %v297 = vld [vmem:[#allocation5 + $0x8] sm:$0xf]
        %v298 = vld [vmem:[#allocation5 + $0xc] sm:$0xf]
        %v299 = vld [vmem:[#allocation5 + $0x10] sm:$0xf]
        %v300 = vld [vmem:[#allocation5 + $0x14] sm:$0xf]
        %v301 = vld [vmem:[#allocation5 + $0x18] sm:$0xf]
        %v302 = vld [vmem:[#allocation5 + $0x1c] sm:$0xf]
        %v303 = vld [vmem:[#allocation5 + $0x20] sm:$0xf]
        %v304 = vld [vmem:[#allocation5 + $0x24] sm:$0xf]
        %v305 = vld [vmem:[#allocation5 + $0x28] sm:$0xf]
        %v306 = vld [vmem:[#allocation5 + $0x2c] sm:$0xf]
        %v307 = vld [vmem:[#allocation5 + $0x30] sm:$0xf]
        %v308 = vld [vmem:[#allocation5 + $0x34] sm:$0xf]
        %v309 = vld [vmem:[#allocation5 + $0x38] sm:$0xf]
        %v310 = vld [vmem:[#allocation5 + $0x3c] sm:$0xf]
        %v311 = vld [vmem:[%s2] sm:$0x1]
        %v313 = vlaneseq
        %v314 = vshrl.u32 %v313, 7
        %v315 = vsub.s32 0, %v314
        %v316 = vrot.slane %v311, %v315
        %v334 = vunpack.c.l.b16 %v295
        %v335 = vunpack.c.l.b16 %v296
        %v336 = vunpack.c.l.b16 %v297
        %v337 = vunpack.c.l.b16 %v298
        %v338 = vunpack.c.l.b16 %v299
        %v339 = vunpack.c.l.b16 %v300
        %v340 = vunpack.c.l.b16 %v301
        %v341 = vunpack.c.l.b16 %v302
        %v342 = vunpack.c.l.b16 %v303
        %v343 = vunpack.c.l.b16 %v304
        %v344 = vunpack.c.l.b16 %v305
        %v345 = vunpack.c.l.b16 %v306
        %v346 = vunpack.c.l.b16 %v307
        %v347 = vunpack.c.l.b16 %v308
        %v348 = vunpack.c.l.b16 %v309
        %v349 = vunpack.c.l.b16 %v310
        %v350 = vpack.c.b16 %v335, %v334
        %v351 = vpack.c.b16 %v337, %v336
        %v352 = vpack.c.b16 %v339, %v338
        %v353 = vpack.c.b16 %v341, %v340
        %v354 = vpack.c.b16 %v343, %v342
        %v355 = vpack.c.b16 %v345, %v344
        %v356 = vpack.c.b16 %v347, %v346
        %v357 = vpack.c.b16 %v349, %v348
        %366 = vmatprep.subr.bf16.mxu0 0
        %367 = vmatpush1.bf16.msra.mxu0 %v357
        %368 = vmatprep.subr.bf16.mxu0 0
        %369 = vmatpush1.bf16.msra.mxu0 %v356
        %370 = vmatprep.subr.bf16.mxu0 0
        %371 = vmatpush1.bf16.msra.mxu0 %v355
        %372 = vmatprep.subr.bf16.mxu0 0
        %373 = vmatpush1.bf16.msra.mxu0 %v354
        %374 = vmatprep.subr.bf16.mxu0 0
        %375 = vmatpush1.bf16.msra.mxu0 %v353
        %376 = vmatprep.subr.bf16.mxu0 0
        %377 = vmatpush1.bf16.msra.mxu0 %v352
        %378 = vmatprep.subr.bf16.mxu0 0
        %379 = vmatpush1.bf16.msra.mxu0 %v351
        %380 = vmatprep.subr.bf16.mxu0 0
        %381 = vmatpush1.bf16.msra.mxu0 %v350
        %382 = vmatprep.subr.bf16.mxu0 0
        %383 = vmatpush2.bf16.msra.mxu0 0
        %384 = vmatprep.subr.bf16.mxu0 0
        %385 = vmatpush2.bf16.msra.mxu0 0
        %386 = vmatprep.subr.bf16.mxu0 0
        %387 = vmatpush2.bf16.msra.mxu0 0
        %388 = vmatprep.subr.bf16.mxu0 0
        %389 = vmatpush2.bf16.msra.mxu0 0
        %390 = vmatprep.subr.bf16.mxu0 0
        %391 = vmatpush2.bf16.msra.mxu0 0
        %392 = vmatprep.subr.bf16.mxu0 0
        %393 = vmatpush2.bf16.msra.mxu0 0
        %394 = vmatprep.subr.bf16.mxu0 0
        %395 = vmatpush2.bf16.msra.mxu0 0
        %396 = vmatprep.subr.bf16.mxu0 0
        %397 = vmatpush2.bf16.msra.mxu0 0
        %398 = vmatprep.mubr.bf16.mxu0 0
        %399 = vmatmul.mubr.bf16.gmra.mxu0 %v288
        %v400 = vpop.f32.mrf.mxu0
        %v401 = vadd.f32 %v316, %v400
        %v402 = vpop.f32.mrf.mxu0
        %v403 = vpop.f32.mrf.mxu0
        %v404 = vadd.f32 %v316, %v403
        %v405 = vpop.f32.mrf.mxu0
        %406 = vmatprep.mubr.bf16.mxu0 0
        %407 = vmatmul.mubr.bf16.gmra.mxu0 %v289
        %v408 = vpop.f32.mrf.mxu0
        %v409 = vadd.f32 %v316, %v408
        %v410 = vpop.f32.mrf.mxu0
        %v411 = vpop.f32.mrf.mxu0
        %v412 = vadd.f32 %v316, %v411
        %v413 = vpop.f32.mrf.mxu0
        %414 = vmatprep.mubr.bf16.mxu0 0
        %415 = vmatmul.mubr.bf16.gmra.mxu0 %v290
        %v416 = vpop.f32.mrf.mxu0
        %v417 = vadd.f32 %v316, %v416
        %v418 = vpop.f32.mrf.mxu0
        %v419 = vpop.f32.mrf.mxu0
        %v420 = vadd.f32 %v316, %v419
        %v421 = vpop.f32.mrf.mxu0
        %422 = vmatprep.mubr.bf16.mxu0 0
        %423 = vmatmul.mubr.bf16.gmra.mxu0 %v291
        %v424 = vpop.f32.mrf.mxu0
        %v425 = vadd.f32 %v316, %v424
        %v426 = vpop.f32.mrf.mxu0
        %v427 = vpop.f32.mrf.mxu0
        %v428 = vadd.f32 %v316, %v427
        %v429 = vpop.f32.mrf.mxu0
        %430 = vmatprep.mubr.bf16.mxu0 0
        %431 = vmatmul.mubr.bf16.gmra.mxu0 %v292
        %v432 = vpop.f32.mrf.mxu0
        %v433 = vadd.f32 %v316, %v432
        %v434 = vpop.f32.mrf.mxu0
        %v435 = vpop.f32.mrf.mxu0
        %v436 = vadd.f32 %v316, %v435
        %v437 = vpop.f32.mrf.mxu0
        %438 = vmatprep.mubr.bf16.mxu0 0
        %439 = vmatmul.mubr.bf16.gmra.mxu0 %v293
        %v440 = vpop.f32.mrf.mxu0
        %v441 = vadd.f32 %v316, %v440
        %v442 = vpop.f32.mrf.mxu0
        %v443 = vpop.f32.mrf.mxu0
        %v444 = vadd.f32 %v316, %v443
        %v445 = vpop.f32.mrf.mxu0
        %446 = vmatprep.mubr.bf16.mxu0 0
        %447 = vmatmul.mubr.bf16.gmra.mxu0 %v294
        %v448 = vpop.f32.mrf.mxu0
        %v449 = vadd.f32 %v316, %v448
        %v450 = vpop.f32.mrf.mxu0
        %v451 = vpop.f32.mrf.mxu0
        %v452 = vpop.f32.mrf.mxu0
        %453 = vdwg.mxu0
        %v454 = vmax.f32 %v401, 0.0
        %v455 = vmax.f32 %v404, 0.0
        %v456 = vmax.f32 %v409, 0.0
        %v457 = vmax.f32 %v412, 0.0
        %v458 = vmax.f32 %v417, 0.0
        %v459 = vmax.f32 %v420, 0.0
        %v460 = vmax.f32 %v425, 0.0
        %v461 = vmax.f32 %v428, 0.0
        %v462 = vmax.f32 %v433, 0.0
        %v463 = vmax.f32 %v436, 0.0
        %v464 = vmax.f32 %v441, 0.0
        %v465 = vmax.f32 %v444, 0.0
        %v466 = vmax.f32 %v449, 0.0
        %v467 = vpack.c.bf16 %v455, %v454
        %v468 = vpack.c.bf16 %v457, %v456
        %v469 = vpack.c.bf16 %v459, %v458
        %v470 = vpack.c.bf16 %v461, %v460
        %v471 = vpack.c.bf16 %v463, %v462
        %v472 = vpack.c.bf16 %v465, %v464
        %v473 = vpack.c.bf16 %v466, %v466
        %v474 = vld [vmem:[#allocation7] sm:$0xf]
        %v475 = vld [vmem:[#allocation7 + $0x4] sm:$0xf]
        %v476 = vld [vmem:[#allocation7 + $0x8] sm:$0xf]
        %v477 = vld [vmem:[#allocation7 + $0xc] sm:$0xf]
        %v478 = vld [vmem:[#allocation7 + $0x10] sm:$0xf]
        %v479 = vld [vmem:[#allocation7 + $0x14] sm:$0xf]
        %v480 = vld [vmem:[#allocation7 + $0x18] sm:$0xf]
        %v481 = vld [vmem:[#allocation7 + $0x1c] sm:$0xf]
        %v482 = vld [vmem:[#allocation7 + $0x20] sm:$0xf]
        %v483 = vld [vmem:[#allocation7 + $0x24] sm:$0xf]
        %v484 = vld [vmem:[#allocation7 + $0x28] sm:$0xf]
        %v485 = vld [vmem:[#allocation7 + $0x2c] sm:$0xf]
        %v486 = vld [vmem:[#allocation7 + $0x30] sm:$0xf]
        %v487 = vld [vmem:[#allocation7 + $0x34] sm:$0xf]
        %v488 = vld [vmem:[#allocation7 + $0x38] sm:$0xf]
        %v489 = vld [vmem:[#allocation7 + $0x3c] sm:$0xf]
        %v490 = vld [vmem:[%s4] sm:$0x1]
        %v492 = vlaneseq
        %v493 = vshrl.u32 %v492, 7
        %v494 = vsub.s32 0, %v493
        %v495 = vrot.slane %v490, %v494
        %v513 = vunpack.c.l.b16 %v474
        %v514 = vunpack.c.l.b16 %v475
        %v515 = vunpack.c.l.b16 %v476
        %v516 = vunpack.c.l.b16 %v477
        %v517 = vunpack.c.l.b16 %v478
        %v518 = vunpack.c.l.b16 %v479
        %v519 = vunpack.c.l.b16 %v480
        %v520 = vunpack.c.l.b16 %v481
        %v521 = vunpack.c.l.b16 %v482
        %v522 = vunpack.c.l.b16 %v483
        %v523 = vunpack.c.l.b16 %v484
        %v524 = vunpack.c.l.b16 %v485
        %v525 = vunpack.c.l.b16 %v486
        %v526 = vunpack.c.l.b16 %v487
        %v527 = vunpack.c.l.b16 %v488
        %v528 = vunpack.c.l.b16 %v489
        %v529 = vpack.c.b16 %v514, %v513
        %v530 = vpack.c.b16 %v516, %v515
        %v531 = vpack.c.b16 %v518, %v517
        %v532 = vpack.c.b16 %v520, %v519
        %v533 = vpack.c.b16 %v522, %v521
        %v534 = vpack.c.b16 %v524, %v523
        %v535 = vpack.c.b16 %v526, %v525
        %v536 = vpack.c.b16 %v528, %v527
        %545 = vmatprep.subr.bf16.mxu0 0
        %546 = vmatpush1.bf16.msra.mxu0 %v536
        %547 = vmatprep.subr.bf16.mxu0 0
        %548 = vmatpush1.bf16.msra.mxu0 %v535
        %549 = vmatprep.subr.bf16.mxu0 0
        %550 = vmatpush1.bf16.msra.mxu0 %v534
        %551 = vmatprep.subr.bf16.mxu0 0
        %552 = vmatpush1.bf16.msra.mxu0 %v533
        %553 = vmatprep.subr.bf16.mxu0 0
        %554 = vmatpush1.bf16.msra.mxu0 %v532
        %555 = vmatprep.subr.bf16.mxu0 0
        %556 = vmatpush1.bf16.msra.mxu0 %v531
        %557 = vmatprep.subr.bf16.mxu0 0
        %558 = vmatpush1.bf16.msra.mxu0 %v530
        %559 = vmatprep.subr.bf16.mxu0 0
        %560 = vmatpush1.bf16.msra.mxu0 %v529
        %561 = vmatprep.subr.bf16.mxu0 0
        %562 = vmatpush2.bf16.msra.mxu0 0
        %563 = vmatprep.subr.bf16.mxu0 0
        %564 = vmatpush2.bf16.msra.mxu0 0
        %565 = vmatprep.subr.bf16.mxu0 0
        %566 = vmatpush2.bf16.msra.mxu0 0
        %567 = vmatprep.subr.bf16.mxu0 0
        %568 = vmatpush2.bf16.msra.mxu0 0
        %569 = vmatprep.subr.bf16.mxu0 0
        %570 = vmatpush2.bf16.msra.mxu0 0
        %571 = vmatprep.subr.bf16.mxu0 0
        %572 = vmatpush2.bf16.msra.mxu0 0
        %573 = vmatprep.subr.bf16.mxu0 0
        %574 = vmatpush2.bf16.msra.mxu0 0
        %575 = vmatprep.subr.bf16.mxu0 0
        %576 = vmatpush2.bf16.msra.mxu0 0
        %577 = vmatprep.mubr.bf16.mxu0 0
        %578 = vmatmul.mubr.bf16.gmra.mxu0 %v467
        %v579 = vpop.f32.mrf.mxu0
        %v580 = vadd.f32 %v495, %v579
        %v581 = vpop.f32.mrf.mxu0
        %v582 = vpop.f32.mrf.mxu0
        %v583 = vadd.f32 %v495, %v582
        %v584 = vpop.f32.mrf.mxu0
        %585 = vmatprep.mubr.bf16.mxu0 0
        %586 = vmatmul.mubr.bf16.gmra.mxu0 %v468
        %v587 = vpop.f32.mrf.mxu0
        %v588 = vadd.f32 %v495, %v587
        %v589 = vpop.f32.mrf.mxu0
        %v590 = vpop.f32.mrf.mxu0
        %v591 = vadd.f32 %v495, %v590
        %v592 = vpop.f32.mrf.mxu0
        %593 = vmatprep.mubr.bf16.mxu0 0
        %594 = vmatmul.mubr.bf16.gmra.mxu0 %v469
        %v595 = vpop.f32.mrf.mxu0
        %v596 = vadd.f32 %v495, %v595
        %v597 = vpop.f32.mrf.mxu0
        %v598 = vpop.f32.mrf.mxu0
        %v599 = vadd.f32 %v495, %v598
        %v600 = vpop.f32.mrf.mxu0
        %601 = vmatprep.mubr.bf16.mxu0 0
        %602 = vmatmul.mubr.bf16.gmra.mxu0 %v470
        %v603 = vpop.f32.mrf.mxu0
        %v604 = vadd.f32 %v495, %v603
        %v605 = vpop.f32.mrf.mxu0
        %v606 = vpop.f32.mrf.mxu0
        %v607 = vadd.f32 %v495, %v606
        %v608 = vpop.f32.mrf.mxu0
        %609 = vmatprep.mubr.bf16.mxu0 0
        %610 = vmatmul.mubr.bf16.gmra.mxu0 %v471
        %v611 = vpop.f32.mrf.mxu0
        %v612 = vadd.f32 %v495, %v611
        %v613 = vpop.f32.mrf.mxu0
        %v614 = vpop.f32.mrf.mxu0
        %v615 = vadd.f32 %v495, %v614
        %v616 = vpop.f32.mrf.mxu0
        %617 = vmatprep.mubr.bf16.mxu0 0
        %618 = vmatmul.mubr.bf16.gmra.mxu0 %v472
        %v619 = vpop.f32.mrf.mxu0
        %v620 = vadd.f32 %v495, %v619
        %v621 = vpop.f32.mrf.mxu0
        %v622 = vpop.f32.mrf.mxu0
        %v623 = vadd.f32 %v495, %v622
        %v624 = vpop.f32.mrf.mxu0
        %625 = vmatprep.mubr.bf16.mxu0 0
        %626 = vmatmul.mubr.bf16.gmra.mxu0 %v473
        %v627 = vpop.f32.mrf.mxu0
        %v628 = vadd.f32 %v495, %v627
        %v629 = vpop.f32.mrf.mxu0
        %v630 = vpop.f32.mrf.mxu0
        %v631 = vpop.f32.mrf.mxu0
        %632 = vdwg.mxu0
        %v633 = vadd.f32 %v580, %v275
        %v634 = vadd.f32 %v583, %v276
        %v635 = vadd.f32 %v588, %v277
        %v636 = vadd.f32 %v591, %v278
        %v637 = vadd.f32 %v596, %v279
        %v638 = vadd.f32 %v599, %v280
        %v639 = vadd.f32 %v604, %v281
        %v640 = vadd.f32 %v607, %v282
        %v641 = vadd.f32 %v612, %v283
        %v642 = vadd.f32 %v615, %v284
        %v643 = vadd.f32 %v620, %v285
        %v644 = vadd.f32 %v623, %v286
        %v645 = vadd.f32 %v628, %v287
        %v646 = vmax.f32 %v633, 0.0
        %v647 = vmax.f32 %v634, 0.0
        %v648 = vmax.f32 %v635, 0.0
        %v649 = vmax.f32 %v636, 0.0
        %v650 = vmax.f32 %v637, 0.0
        %v651 = vmax.f32 %v638, 0.0
        %v652 = vmax.f32 %v639, 0.0
        %v653 = vmax.f32 %v640, 0.0
        %v654 = vmax.f32 %v641, 0.0
        %v655 = vmax.f32 %v642, 0.0
        %v656 = vmax.f32 %v643, 0.0
        %v657 = vmax.f32 %v644, 0.0
        %v658 = vmax.f32 %v645, 0.0
        %659 = vst [vmem:[%s271] sm:$0xff] %v646
        %660 = vst [vmem:[%s271 + $0x8] sm:$0xff] %v647
        %661 = vst [vmem:[%s271 + $0x10] sm:$0xff] %v648
        %662 = vst [vmem:[%s271 + $0x18] sm:$0xff] %v649
        %663 = vst [vmem:[%s271 + $0x20] sm:$0xff] %v650
        %664 = vst [vmem:[%s271 + $0x28] sm:$0xff] %v651
        %665 = vst [vmem:[%s271 + $0x30] sm:$0xff] %v652
        %666 = vst [vmem:[%s271 + $0x38] sm:$0xff] %v653
        %667 = vst [vmem:[%s271 + $0x40] sm:$0xff] %v654
        %668 = vst [vmem:[%s271 + $0x48] sm:$0xff] %v655
        %669 = vst [vmem:[%s271 + $0x50] sm:$0xff] %v656
        %670 = vst [vmem:[%s271 + $0x58] sm:$0xff] %v657
        %671 = vst [vmem:[%s271 + $0x60] sm:$0xff] %v658
        %s672 = sand.u32 %s141, 1
        %s673 = scalar_lea.sflag [#allocation4], %s672
        %s674 = sand.u32 %s141, 1
        %s675 = smul.addr %s674, 104
        %s676 = scalar_lea.vmem [#allocation8], %s675
        // Predicated region
        $region53: #{tpu_custom_call.1} parent=39 // pred_check
          %p677 = pneg %p151
        $region54: #{tpu_custom_call.1} parent=39 // pred_check_branch
          %679 = sbr.rel (%p677) target = $region56
        $region55: #{tpu_custom_call.1} parent=39 // pred_region
          %s680 = smul.u32 13, %s23
          %s682 = ssub.s32 1664, 1664
          %683 = vsyncadd %s673, %s682
          %s684 = smul.addr %s680, 128
          %s685 = scalar_lea.hbm %s5, %s684
          %s686 = sshll.u32 %s676, 4
          %s687 = int_to_ptr.vmem [resolvable:$true] %s686
          %692 = dma.vmem_to_hbm [thread:$0]  %s687, 1664, %s685, %s673, 128, 128, 8
        $region56: #{tpu_custom_call.1} parent=39 // pred_fallthru
          _
      $region40: #{tpu_custom_call.1} parent=5 // pred_fallthru
        _
      %p693 = scmp.le.s32.totalorder 2, %s18
      // Predicated region
      $region57: #{tpu_custom_call.1} parent=5 // pred_check
        %p694 = pneg %p693
      $region58: #{tpu_custom_call.1} parent=5 // pred_check_branch
        %696 = sbr.rel (%p694) target = $region60
      $region59: #{tpu_custom_call.1} parent=5 // pred_region
        %s697 = ssub.s32 %s18, 2
        // Predicated region
        $region61: #{tpu_custom_call.1} parent=59 // pred_check
          %p698 = pneg %p157
        $region62: #{tpu_custom_call.1} parent=59 // pred_check_branch
          %700 = sbr.rel (%p698) target = $region64
        $region63: #{tpu_custom_call.1} parent=59 // pred_region
          %s701 = sand.u32 %s142, 1
          %s702 = scalar_lea.sflag [#allocation4], %s701
          %s703 = sand.u32 %s142, 1
          %s704 = smul.addr %s703, 104
          %s705 = scalar_lea.vmem [#allocation8], %s704
          %706 = dma.done %s702, 1664
        $region64: #{tpu_custom_call.1} parent=59 // pred_fallthru
          _
      $region60: #{tpu_custom_call.1} parent=5 // pred_fallthru
        _
    $region6: #{tpu_custom_call.1} parent=1 // loop_footer
      %s22 = sadd.s32 1, %s18
    $region7: #{tpu_custom_call.1} parent=1 // loop_footer_branch
      %17 = sbr.rel target = $region3
    $region8: #{tpu_custom_call.1} parent=1 // loop_exit
      _
    %707 = vsyncpa [#allocation3], 1
    %s708 = scalar_lea.sflag [#allocation3], 1
    %709 = vsyncpa %s708, 1
    %710 = vsyncpa [#allocation6], 1
    %711 = vsyncpa [#allocation4], 1
    %s712 = scalar_lea.sflag [#allocation4], 1
    %713 = vsyncpa %s712, 1

</llo_original>
